<compile_context>
chip_gen: v7x
topology: tpu7x:2x2x1
jax: 0.10.0
libtpu: 0.0.40
codegen_flags: <defaults>
</compile_context>

<pallas_src>
import functools

import jax
import jax.numpy as jnp
from jax.experimental import pallas as pl
from jax.experimental.pallas import tpu as pltpu

_LANE = 128
_SUBLANE = 8
_VREG = _LANE * _SUBLANE  # 1024 f32 batch elements per full vreg


def _round_up(n: int, m: int) -> int:
    return ((n + m - 1) // m) * m


def _cdiv(n: int, m: int) -> int:
    return (n + m - 1) // m


def _linear_kernel(wb_ref, x_ref, o_ref):
    # wb_ref: SMEM (4,) f32 = [w0, w1, w2, b]
    # x_ref:  VMEM (3, 8, TB/8) -- batch packed into full (8,128) vregs
    # o_ref:  VMEM (8, TB/8)    -- lane+sublane dense output slab
    w0 = wb_ref[0]
    w1 = wb_ref[1]
    w2 = wb_ref[2]
    b = wb_ref[3]
    x0 = x_ref[0]  # (8, TB/8)
    x1 = x_ref[1]
    x2 = x_ref[2]
    # y = x @ W.T + b as three full-width VPU multiply-adds (no XLU reduce).
    o_ref[...] = (w0 * x0 + w1 * x1 + w2 * x2 + b).astype(o_ref.dtype)


def _pick_tiling(B: int, max_tile_b: int):
    """Balanced tiles: pad <= one vreg-row per tile, all grid steps equal."""
    num_tiles = _cdiv(B, max_tile_b)
    # Give both v7x TensorCores work when the batch is large enough.
    if num_tiles == 1 and B >= 8 * _VREG:
        num_tiles = 2
    tile_b = _round_up(_cdiv(B, num_tiles), _VREG)
    b_padded = num_tiles * tile_b
    return num_tiles, tile_b, b_padded


def _linear_forward_fm(x_fm, weight, bias, *, max_tile_b: int):
    """Feature-major core: x_fm (3, B) f32 -> flat padded output (b_padded,) f32."""
    K, B = x_fm.shape
    assert K == 3, f"expected in_features=3, got {K}"
    assert weight.shape == (1, 3) and bias.shape == (1,)

    # TODO(synk): bf16 inputs would need (16,128) packing; compute in f32 here.
    x_fm = x_fm.astype(jnp.float32)
    wb = jnp.concatenate(
        [weight.reshape(-1), bias.reshape(-1)]
    ).astype(jnp.float32)  # SMEM scalar vector [w0, w1, w2, b]

    num_tiles, tile_b, b_padded = _pick_tiling(B, max_tile_b)
    tile_lanes = tile_b // _SUBLANE

    if b_padded != B:
        # Zero pad: tail lanes compute `b` and are sliced off by the caller.
        x_fm = jnp.pad(x_fm, ((0, 0), (0, b_padded - B)))

    # Pack batch into full (8,128) vregs: (3, Bp) -> (3, 8, Bp/8). Contiguous
    # row-major reshape; the matching output unpack below uses the same Bp.
    x_pk = x_fm.reshape(3, _SUBLANE, b_padded // _SUBLANE)

    # Real double-buffered footprint from the packed block sizes (+ headroom).
    in_block_bytes = 3 * tile_b * 4
    out_block_bytes = tile_b * 4
    vmem_bytes = 2 * (in_block_bytes + out_block_bytes) + (4 << 20)

    out = pl.pallas_call(
        _linear_kernel,
        out_shape=jax.ShapeDtypeStruct((_SUBLANE, b_padded // _SUBLANE), jnp.float32),
        grid=(num_tiles,),
        in_specs=[
            # Tiny parameter vector lives in SMEM, read as scalars.
            pl.BlockSpec(memory_space=pltpu.MemorySpace.SMEM),
            # (3, 8, TB/8): last two dims are (8, multiple of 128) -> dense vregs.
            pl.BlockSpec((3, _SUBLANE, tile_lanes), lambda i: (0, 0, i)),
        ],
        out_specs=pl.BlockSpec((_SUBLANE, tile_lanes), lambda i: (0, i)),
        compiler_params=pltpu.CompilerParams(
            dimension_semantics=("parallel",),
            vmem_limit_bytes=vmem_bytes,
        ),
    )(wb, x_pk)

    return out.reshape(b_padded)


@functools.partial(jax.jit, static_argnames=("max_tile_b",))
def linear_forward(x, weight, bias, *, max_tile_b: int = 256 * 1024):
    """PyTorch-facing entry: x (B, 3), weight (1, 3), bias (1,) -> (B, 1).

    Note: the internal (B,3)->(3,B) transpose is real HBM traffic; callers
    that already hold feature-major data should use
    linear_forward_feature_major() instead.
    """
    B, K = x.shape
    out_flat = _linear_forward_fm(x.T, weight, bias, max_tile_b=max_tile_b)
    return out_flat[:B].reshape(B, 1)


@functools.partial(jax.jit, static_argnames=("max_tile_b",))
def linear_forward_feature_major(x_fm, weight, bias, *, max_tile_b: int = 256 * 1024):
    """Transpose-free entry: x_fm (3, B) -> (B,) predictions."""
    _, B = x_fm.shape
    out_flat = _linear_forward_fm(x_fm, weight, bias, max_tile_b=max_tile_b)
    return out_flat[:B]


if __name__ == "__main__":
    key = jax.random.PRNGKey(0)
    kx, kw, kb = jax.random.split(key, 3)

    batch = 8
    x = jax.random.normal(kx, (batch, 3), dtype=jnp.float32)

    # nn.Linear(3, 1)-style init: uniform in +/- 1/sqrt(in_features).
    bound = 1.0 / jnp.sqrt(3.0)
    weight = jax.random.uniform(kw, (1, 3), jnp.float32, -bound, bound)
    bias = jax.random.uniform(kb, (1,), jnp.float32, -bound, bound)

    out = linear_forward(x, weight, bias)
    out = jax.block_until_ready(out)

    # Reference check in plain JAX.
    ref = x @ weight.T + bias
    assert out.shape == (batch, 1), out.shape
    assert jnp.allclose(out, ref, atol=1e-5, rtol=1e-5)

    # Also exercise the feature-major (transpose-free) path.
    out_fm = jax.block_until_ready(
        linear_forward_feature_major(x.T, weight, bias)
    )
    assert jnp.allclose(out_fm.reshape(batch, 1), ref, atol=1e-5, rtol=1e-5)

    print("KERNEL_OK")
</pallas_src>

<mosaic_0001>
module attributes {stable_mosaic.version = 11 : i64} {
  func.func @_linear_kernel(%arg0: i32, %arg1: memref<4xf32, #tpu.memory_space<smem>>, %arg2: memref<3x8x128xf32, #tpu.memory_space<vmem>>, %arg3: memref<8x128xf32, #tpu.memory_space<vmem>>) attributes {dimension_semantics = [#tpu.dimension_semantics<parallel>], iteration_bounds = array<i64: 1>, scalar_prefetch = 0 : i64, scratch_operands = 0 : i64, tpu.core_type = #tpu.core_type<tc>, window_params = [{transform_indices = @transform_0, window_bounds = array<i64: 4>}, {transform_indices = @transform_1, window_bounds = array<i64: 3, 8, 128>}, {transform_indices = @transform_2, window_bounds = array<i64: 8, 128>}]} {
    %c0 = arith.constant 0 : index
    %0 = memref.load %arg1[%c0] : memref<4xf32, #tpu.memory_space<smem>>
    %c1 = arith.constant 1 : index
    %1 = memref.load %arg1[%c1] : memref<4xf32, #tpu.memory_space<smem>>
    %c2 = arith.constant 2 : index
    %2 = memref.load %arg1[%c2] : memref<4xf32, #tpu.memory_space<smem>>
    %c3 = arith.constant 3 : index
    %3 = memref.load %arg1[%c3] : memref<4xf32, #tpu.memory_space<smem>>
    %c0_0 = arith.constant 0 : index
    %c0_1 = arith.constant 0 : index
    %c0_2 = arith.constant 0 : index
    %4 = vector.load %arg2[%c0_0, %c0_1, %c0_2] : memref<3x8x128xf32, #tpu.memory_space<vmem>>, vector<1x8x128xf32>
    %5 = vector.shape_cast %4 : vector<1x8x128xf32> to vector<8x128xf32>
    %c1_3 = arith.constant 1 : index
    %c0_4 = arith.constant 0 : index
    %c0_5 = arith.constant 0 : index
    %6 = vector.load %arg2[%c1_3, %c0_4, %c0_5] : memref<3x8x128xf32, #tpu.memory_space<vmem>>, vector<1x8x128xf32>
    %7 = vector.shape_cast %6 : vector<1x8x128xf32> to vector<8x128xf32>
    %c2_6 = arith.constant 2 : index
    %c0_7 = arith.constant 0 : index
    %c0_8 = arith.constant 0 : index
    %8 = vector.load %arg2[%c2_6, %c0_7, %c0_8] : memref<3x8x128xf32, #tpu.memory_space<vmem>>, vector<1x8x128xf32>
    %9 = vector.shape_cast %8 : vector<1x8x128xf32> to vector<8x128xf32>
    %10 = vector.broadcast %0 : f32 to vector<8x128xf32>
    %11 = arith.mulf %10, %5 : vector<8x128xf32>
    %12 = vector.broadcast %1 : f32 to vector<8x128xf32>
    %13 = arith.mulf %12, %7 : vector<8x128xf32>
    %14 = arith.addf %11, %13 : vector<8x128xf32>
    %15 = vector.broadcast %2 : f32 to vector<8x128xf32>
    %16 = arith.mulf %15, %9 : vector<8x128xf32>
    %17 = arith.addf %14, %16 : vector<8x128xf32>
    %18 = vector.broadcast %3 : f32 to vector<8x128xf32>
    %19 = arith.addf %17, %18 : vector<8x128xf32>
    %c0_9 = arith.constant 0 : index
    %c0_10 = arith.constant 0 : index
    %20 = vector.load %arg3[%c0_9, %c0_10] : memref<8x128xf32, #tpu.memory_space<vmem>>, vector<8x128xf32>
    tpu.vector_store %arg3[%c0_9, %c0_10], %19 {strides = array<i32>} : memref<8x128xf32, #tpu.memory_space<vmem>>, vector<8x128xf32>,
    return
  }
  func.func @transform_0(%arg0: i32) -> i32 {
    %c0_i32 = arith.constant 0 : i32
    %c0_i32_0 = arith.constant 0 : i32
    return %c0_i32 : i32
  }
  func.func @transform_1(%arg0: i32) -> (i32, i32, i32) {
    %c0_i32 = arith.constant 0 : i32
    %c0_i32_0 = arith.constant 0 : i32
    %c0_i32_1 = arith.constant 0 : i32
    return %c0_i32, %c0_i32_0, %arg0 : i32, i32, i32
  }
  func.func @transform_2(%arg0: i32) -> (i32, i32) {
    %c0_i32 = arith.constant 0 : i32
    %c0_i32_0 = arith.constant 0 : i32
    return %c0_i32, %arg0 : i32, i32
  }
}

</mosaic_0001>

<llo_original>
// kernel: linear_forward.1
$region0: #{linear_forward.1}
  #allocation0 [shape = 'u32[]', space=smem, size = 0x4, offset = 0x4, fixed_abs, tag = 'smem constant byte address 0x4 - core index']
  #allocation1 [shape = 'u32[144,128]{1,0:T(1,128)}', space=vmem, size = 0x12000, scoped, tag = 'internal scratch']
  %s0 = inlined_call_operand.vmem [shape: f32[4], index: 0, kind: input, shape index: {}]
  %s1 = inlined_call_operand.vmem [shape: f32[3,8,128], index: 1, kind: input, shape index: {}]
  %s2 = inlined_call_operand.vmem [shape: f32[8,128], index: 2, kind: output, shape index: {}]
  %s3 = sld [smem:[#allocation0]]
  $region22: #{linear_forward.1} parent=0
    _
  %s5 = ssub.s32 1, %s3
  %s6 = scalar_select 0, %s5, %s3
  $region1: #{linear_forward.1} parent=0
    #allocation2 [shape = 'u8[512]{0}', space=smem, size = 0x200, scoped, tag = 'input window, operand 0, single buffered']
    #allocation3 [shape = 's32[1]{0}', space=sflag, size = 0x4, scoped, tag = 'scoped memory for linear_forward.1']
    %7 = vsyncpa [#allocation3], 0
    // Predicated region
    $region2: #{linear_forward.1} parent=1 // pred_check
      _
    $region3: #{linear_forward.1} parent=1 // pred_check_branch
      %9 = sbr.rel (0) target = $region5
    $region4: #{linear_forward.1} parent=1 // pred_region
      %s11 = ssub.s32 16, 16
      %12 = vsyncadd [#allocation3], %s11
      %s14 = sshll.u32 %s0, 4
      %s15 = int_to_ptr.vmem [resolvable:$true] %s14
      %17 = dma.vmem_to_smem %s15, 16, [#allocation2], [#allocation3]
    $region5: #{linear_forward.1} parent=1 // pred_fallthru
      _
    // Predicated region
    $region6: #{linear_forward.1} parent=1 // pred_check
      _
    $region7: #{linear_forward.1} parent=1 // pred_check_branch
      %19 = sbr.rel (0) target = $region9
    $region8: #{linear_forward.1} parent=1 // pred_region
      _
    $region9: #{linear_forward.1} parent=1 // pred_fallthru
      _
    // Predicated region
    $region10: #{linear_forward.1} parent=1 // pred_check
      _
    $region11: #{linear_forward.1} parent=1 // pred_check_branch
      %21 = sbr.rel (0) target = $region13
    $region12: #{linear_forward.1} parent=1 // pred_region
      %22 = dma.done [#allocation3], 16
    $region13: #{linear_forward.1} parent=1 // pred_fallthru
      _
    %23 = sfence
    %s24 = sld [smem:[#allocation2]]
    %s25 = sld [smem:[#allocation2 + $0x1]]
    %s26 = sld [smem:[#allocation2 + $0x2]]
    %s27 = sld [smem:[#allocation2 + $0x3]]
    %v28 = vld [vmem:[%s1] sm:$0xff]
    %s29 = scalar_lea.vmem %s1, 8
    %v30 = vld [vmem:[%s29] sm:$0xff]
    %s31 = scalar_lea.vmem %s1, 16
    %v32 = vld [vmem:[%s31] sm:$0xff]
    %v33 = vstv %s24
    %v34 = vmul.f32 %v33, %v28
    %v35 = vstv %s25
    %v36 = vmul.f32 %v35, %v30
    %v37 = vadd.f32 %v34, %v36
    %v38 = vstv %s26
    %v39 = vmul.f32 %v38, %v32
    %v40 = vadd.f32 %v37, %v39
    %v41 = vstv %s27
    %v42 = vadd.f32 %v40, %v41
    %43 = vst [vmem:[%s2] sm:$0xff] %v42
    // Predicated region
    $region14: #{linear_forward.1} parent=1 // pred_check
      _
    $region15: #{linear_forward.1} parent=1 // pred_check_branch
      %45 = sbr.rel (0) target = $region17
    $region16: #{linear_forward.1} parent=1 // pred_region
      _
    $region17: #{linear_forward.1} parent=1 // pred_fallthru
      _
    // Predicated region
    $region18: #{linear_forward.1} parent=1 // pred_check
      _
    $region19: #{linear_forward.1} parent=1 // pred_check_branch
      %47 = sbr.rel (0) target = $region21
    $region20: #{linear_forward.1} parent=1 // pred_region
      _
    $region21: #{linear_forward.1} parent=1 // pred_fallthru
      _
    %48 = vsyncpa [#allocation3], 1

</llo_original>
